<compile_context>
chip_gen: v6e
topology: v6e:2x2x1
jax: 0.10.0
libtpu: 0.0.40
codegen_flags: <defaults>
</compile_context>

<pallas_src>
import jax
import jax.numpy as jnp
from jax.experimental import pallas as pl
from jax.experimental.pallas import tpu as pltpu

# ----------------------------- problem sizes -----------------------------
N = 8            # number of graph nodes
DEG = 3          # in-degree of every node (so every node has >=1 incoming edge)
E = N * DEG      # number of edges
IN_DIM = 16      # node feature dim
OUT_DIM = 32     # per-head output dim
NUM_HEADS = 2
D_REL, D_SCO, D_TS = 8, 4, 4   # all_dims['efeat_relation' / 'efeat_score' / 'efeat_timestamp']
NEG_SLOPE = 0.01               # F.leaky_relu default slope
NEG_INF = -1e30


# ------------------------------- kernel ----------------------------------
def gat_kernel(h_ref, rel_ref, sco_ref, ts_ref, ssrc_ref, sdst_ref,
               wn_ref, wr_ref, ws_ref, wt_ref, a_ref, out_ref):
    D = OUT_DIM
    H = NUM_HEADS

    # All heads at once: stacked weights give [*, H*D] outputs from one matmul each.
    z = jnp.dot(h_ref[...], wn_ref[...], preferred_element_type=jnp.float32)     # [N, H*D]
    er = jnp.dot(rel_ref[...], wr_ref[...], preferred_element_type=jnp.float32)  # [E, H*D]
    es = jnp.dot(sco_ref[...], ws_ref[...], preferred_element_type=jnp.float32)  # [E, H*D]
    et = jnp.dot(ts_ref[...], wt_ref[...], preferred_element_type=jnp.float32)   # [E, H*D]

    ssrc = ssrc_ref[...]                                                          # [E, N]
    sdst = sdst_ref[...]                                                          # [E, N]
    z_src = jnp.dot(ssrc, z, preferred_element_type=jnp.float32)                  # [E, H*D]
    z_dst = jnp.dot(sdst, z, preferred_element_type=jnp.float32)                  # [E, H*D]

    # attn_fc(cat([z_src, z_dst, er, es, et])) for all heads, without width-1
    # matmuls: per-lane multiply (VPU) then per-head lane reduction below.
    a = a_ref[...]                                                                # [5, H*D]
    t = (z_src * a[0:1, :] + z_dst * a[1:2, :]
         + er * a[2:3, :] + es * a[3:4, :] + et * a[4:5, :])                      # [E, H*D]

    weighted = []
    for hh in range(H):   # H=2, statically unrolled
        t_h = t[:, hh * D:(hh + 1) * D]                                           # [E, D]
        s_h = jnp.sum(t_h, axis=1, keepdims=True)                                 # [E, 1]
        s_h = jnp.where(s_h > 0, s_h, NEG_SLOPE * s_h)                            # leaky_relu

        # per-destination-node softmax over incoming edges (dst one-hot == mask)
        logits = jnp.where(sdst > 0.5, s_h, NEG_INF)                              # [E, N]
        m = jnp.max(logits, axis=0, keepdims=True)                                # [1, N]
        p = jnp.exp(logits - m) * sdst                                            # [E, N]
        denom = jnp.sum(p, axis=0, keepdims=True)                                 # [1, N]
        denom = jnp.where(denom > 0, denom, 1.0)      # guard zero in-degree nodes
        alpha_en = p / denom                                                      # [E, N]
        alpha_e = jnp.sum(alpha_en, axis=1, keepdims=True)                        # [E, 1]
        weighted.append(alpha_e * z_src[:, hh * D:(hh + 1) * D])                  # [E, D]

    w_all = jnp.concatenate(weighted, axis=1)                                     # [E, H*D]
    # out[n, c] = sum_e sdst[e, n] * w_all[e, c]  ==  sdst^T @ w_all
    out_ref[...] = jax.lax.dot_general(sdst, w_all, (((0,), (0,)), ((), ())),
                                       preferred_element_type=jnp.float32)        # [N, H*D]


# ------------------------------- wrapper ----------------------------------
def multi_head_gat(h, rel, sco, ts, src, dst, params):
    """params: dict of stacked per-head weights (already transposed to [in, out])."""
    H, D = NUM_HEADS, OUT_DIM
    ssrc = jax.nn.one_hot(src, N, dtype=jnp.float32)   # [E, N]
    sdst = jax.nn.one_hot(dst, N, dtype=jnp.float32)   # [E, N]

    # Stack per-head weights along the output axis -> one wide matmul per projection.
    wn = jnp.concatenate([params["wn"][hh] for hh in range(H)], axis=1)   # [IN_DIM, H*D]
    wr = jnp.concatenate([params["wr"][hh] for hh in range(H)], axis=1)   # [D_REL,  H*D]
    ws = jnp.concatenate([params["ws"][hh] for hh in range(H)], axis=1)   # [D_SCO,  H*D]
    wt = jnp.concatenate([params["wt"][hh] for hh in range(H)], axis=1)   # [D_TS,   H*D]
    # attn_fc weight [H, 5D, 1] -> lane-dense [5, H*D]:
    #   a_vec[k, hh*D + d] = a[hh, k*D + d, 0]   (k = src/dst/rel/sco/ts block)
    a = jnp.transpose(params["a"][:, :, 0].reshape(H, 5, D), (1, 0, 2)).reshape(5, H * D)

    vmem = pl.BlockSpec(memory_space=pltpu.MemorySpace.VMEM)
    out = pl.pallas_call(
        gat_kernel,
        out_shape=jax.ShapeDtypeStruct((N, H * D), jnp.float32),
        in_specs=[vmem] * 11,
        out_specs=vmem,
    )(h, rel, sco, ts, ssrc, sdst, wn, wr, ws, wt, a)

    # Output already in merge=='cat' layout: [N, H*OUT_DIM].
    return out


# ----------------------- pure-JAX reference (DGL semantics) -----------------------
def reference(h, rel, sco, ts, src, dst, params):
    head_outs = []
    for hh in range(NUM_HEADS):
        z = h @ params["wn"][hh]                                   # [N, D]
        ef = jnp.concatenate([rel @ params["wr"][hh],
                              sco @ params["ws"][hh],
                              ts @ params["wt"][hh]], axis=-1)     # [E, 3D]
        z2 = jnp.concatenate([z[src], z[dst], ef], axis=-1)        # [E, 5D]
        s = z2 @ params["a"][hh]                                   # [E, 1]
        s = jnp.where(s > 0, s, NEG_SLOPE * s)
        mask = jax.nn.one_hot(dst, N, dtype=jnp.float32)           # [E, N]
        logits = jnp.where(mask > 0.5, s, NEG_INF)
        m = jnp.max(logits, axis=0, keepdims=True)
        p = jnp.exp(logits - m) * mask
        alpha = p / jnp.sum(p, axis=0, keepdims=True)
        head_outs.append(alpha.T @ z[src])                         # [N, D]
    return jnp.concatenate(head_outs, axis=1)


# --------------------------------- main -----------------------------------
if __name__ == "__main__":
    key = jax.random.PRNGKey(0)
    keys = jax.random.split(key, 10)

    # node / edge features
    h = jax.random.normal(keys[0], (N, IN_DIM), dtype=jnp.float32)
    rel = jax.random.normal(keys[1], (E, D_REL), dtype=jnp.float32)
    sco = jax.random.normal(keys[2], (E, D_SCO), dtype=jnp.float32)
    ts = jax.random.normal(keys[3], (E, D_TS), dtype=jnp.float32)

    # graph: every node receives DEG incoming edges (matches DGL mailbox semantics)
    dst = jnp.repeat(jnp.arange(N, dtype=jnp.int32), DEG)                   # [E]
    src = jax.random.randint(keys[4], (E,), 0, N, dtype=jnp.int32)          # [E]

    # deterministic per-head parameters (nn.Linear weights, pre-transposed to [in, out])
    init = lambda k, shape: (0.1 * jax.random.normal(k, shape)).astype(jnp.float32)
    params = {
        "wn": init(keys[5], (NUM_HEADS, IN_DIM, OUT_DIM)),
        "wr": init(keys[6], (NUM_HEADS, D_REL, OUT_DIM)),
        "ws": init(keys[7], (NUM_HEADS, D_SCO, OUT_DIM)),
        "wt": init(keys[8], (NUM_HEADS, D_TS, OUT_DIM)),
        "a":  init(keys[9], (NUM_HEADS, 5 * OUT_DIM, 1)),
    }

    out = jax.block_until_ready(multi_head_gat(h, rel, sco, ts, src, dst, params))
    ref = jax.block_until_ready(reference(h, rel, sco, ts, src, dst, params))

    assert out.shape == (N, NUM_HEADS * OUT_DIM), out.shape
    assert jnp.allclose(out, ref, atol=1e-4, rtol=1e-4), float(jnp.max(jnp.abs(out - ref)))
    print("KERNEL_OK")
</pallas_src>

<mosaic_0001>
module attributes {stable_mosaic.version = 11 : i64} {
  func.func @gat_kernel(%arg0: memref<8x16xf32, #tpu.memory_space<vmem>>, %arg1: memref<24x8xf32, #tpu.memory_space<vmem>>, %arg2: memref<24x4xf32, #tpu.memory_space<vmem>>, %arg3: memref<24x4xf32, #tpu.memory_space<vmem>>, %arg4: memref<24x8xf32, #tpu.memory_space<vmem>>, %arg5: memref<24x8xf32, #tpu.memory_space<vmem>>, %arg6: memref<16x64xf32, #tpu.memory_space<vmem>>, %arg7: memref<8x64xf32, #tpu.memory_space<vmem>>, %arg8: memref<4x64xf32, #tpu.memory_space<vmem>>, %arg9: memref<4x64xf32, #tpu.memory_space<vmem>>, %arg10: memref<5x64xf32, #tpu.memory_space<vmem>>, %arg11: memref<8x64xf32, #tpu.memory_space<vmem>>) attributes {dimension_semantics = [], scalar_prefetch = 0 : i64, scratch_operands = 0 : i64, tpu.core_type = #tpu.core_type<tc>} {
    %c0 = arith.constant 0 : index
    %c0_0 = arith.constant 0 : index
    %0 = vector.load %arg0[%c0, %c0_0] : memref<8x16xf32, #tpu.memory_space<vmem>>, vector<8x16xf32>
    %c0_1 = arith.constant 0 : index
    %c0_2 = arith.constant 0 : index
    %1 = vector.load %arg6[%c0_1, %c0_2] : memref<16x64xf32, #tpu.memory_space<vmem>>, vector<16x64xf32>
    %cst = arith.constant dense<0.000000e+00> : vector<8x64xf32>
    %2 = tpu.matmul %0, %1, %cst {dimension_numbers = #tpu.dot_dimension_numbers<[1], [0], [0], [1], [0, 0, 1, 1], [], []>} : vector<8x16xf32>, vector<16x64xf32>, vector<8x64xf32> -> vector<8x64xf32>
    %c0_3 = arith.constant 0 : index
    %c0_4 = arith.constant 0 : index
    %3 = vector.load %arg1[%c0_3, %c0_4] : memref<24x8xf32, #tpu.memory_space<vmem>>, vector<24x8xf32>
    %c0_5 = arith.constant 0 : index
    %c0_6 = arith.constant 0 : index
    %4 = vector.load %arg7[%c0_5, %c0_6] : memref<8x64xf32, #tpu.memory_space<vmem>>, vector<8x64xf32>
    %cst_7 = arith.constant dense<0.000000e+00> : vector<24x64xf32>
    %5 = tpu.matmul %3, %4, %cst_7 {dimension_numbers = #tpu.dot_dimension_numbers<[1], [0], [0], [1], [0, 0, 1, 1], [], []>} : vector<24x8xf32>, vector<8x64xf32>, vector<24x64xf32> -> vector<24x64xf32>
    %c0_8 = arith.constant 0 : index
    %c0_9 = arith.constant 0 : index
    %6 = vector.load %arg2[%c0_8, %c0_9] : memref<24x4xf32, #tpu.memory_space<vmem>>, vector<24x4xf32>
    %c0_10 = arith.constant 0 : index
    %c0_11 = arith.constant 0 : index
    %7 = vector.load %arg8[%c0_10, %c0_11] : memref<4x64xf32, #tpu.memory_space<vmem>>, vector<4x64xf32>
    %cst_12 = arith.constant dense<0.000000e+00> : vector<24x64xf32>
    %8 = tpu.matmul %6, %7, %cst_12 {dimension_numbers = #tpu.dot_dimension_numbers<[1], [0], [0], [1], [0, 0, 1, 1], [], []>} : vector<24x4xf32>, vector<4x64xf32>, vector<24x64xf32> -> vector<24x64xf32>
    %c0_13 = arith.constant 0 : index
    %c0_14 = arith.constant 0 : index
    %9 = vector.load %arg3[%c0_13, %c0_14] : memref<24x4xf32, #tpu.memory_space<vmem>>, vector<24x4xf32>
    %c0_15 = arith.constant 0 : index
    %c0_16 = arith.constant 0 : index
    %10 = vector.load %arg9[%c0_15, %c0_16] : memref<4x64xf32, #tpu.memory_space<vmem>>, vector<4x64xf32>
    %cst_17 = arith.constant dense<0.000000e+00> : vector<24x64xf32>
    %11 = tpu.matmul %9, %10, %cst_17 {dimension_numbers = #tpu.dot_dimension_numbers<[1], [0], [0], [1], [0, 0, 1, 1], [], []>} : vector<24x4xf32>, vector<4x64xf32>, vector<24x64xf32> -> vector<24x64xf32>
    %c0_18 = arith.constant 0 : index
    %c0_19 = arith.constant 0 : index
    %12 = vector.load %arg4[%c0_18, %c0_19] : memref<24x8xf32, #tpu.memory_space<vmem>>, vector<24x8xf32>
    %c0_20 = arith.constant 0 : index
    %c0_21 = arith.constant 0 : index
    %13 = vector.load %arg5[%c0_20, %c0_21] : memref<24x8xf32, #tpu.memory_space<vmem>>, vector<24x8xf32>
    %cst_22 = arith.constant dense<0.000000e+00> : vector<24x64xf32>
    %14 = tpu.matmul %12, %2, %cst_22 {dimension_numbers = #tpu.dot_dimension_numbers<[1], [0], [0], [1], [0, 0, 1, 1], [], []>} : vector<24x8xf32>, vector<8x64xf32>, vector<24x64xf32> -> vector<24x64xf32>
    %cst_23 = arith.constant dense<0.000000e+00> : vector<24x64xf32>
    %15 = tpu.matmul %13, %2, %cst_23 {dimension_numbers = #tpu.dot_dimension_numbers<[1], [0], [0], [1], [0, 0, 1, 1], [], []>} : vector<24x8xf32>, vector<8x64xf32>, vector<24x64xf32> -> vector<24x64xf32>
    %c0_24 = arith.constant 0 : index
    %c0_25 = arith.constant 0 : index
    %16 = vector.load %arg10[%c0_24, %c0_25] : memref<5x64xf32, #tpu.memory_space<vmem>>, vector<5x64xf32>
    %17 = vector.extract_strided_slice %16 {offsets = [0, 0], sizes = [1, 64], strides = [1, 1]} : vector<5x64xf32> to vector<1x64xf32>
    %18 = vector.broadcast %17 : vector<1x64xf32> to vector<24x64xf32>
    %19 = arith.mulf %14, %18 : vector<24x64xf32>
    %20 = vector.extract_strided_slice %16 {offsets = [1, 0], sizes = [1, 64], strides = [1, 1]} : vector<5x64xf32> to vector<1x64xf32>
    %21 = vector.broadcast %20 : vector<1x64xf32> to vector<24x64xf32>
    %22 = arith.mulf %15, %21 : vector<24x64xf32>
    %23 = arith.addf %19, %22 : vector<24x64xf32>
    %24 = vector.extract_strided_slice %16 {offsets = [2, 0], sizes = [1, 64], strides = [1, 1]} : vector<5x64xf32> to vector<1x64xf32>
    %25 = vector.broadcast %24 : vector<1x64xf32> to vector<24x64xf32>
    %26 = arith.mulf %5, %25 : vector<24x64xf32>
    %27 = arith.addf %23, %26 : vector<24x64xf32>
    %28 = vector.extract_strided_slice %16 {offsets = [3, 0], sizes = [1, 64], strides = [1, 1]} : vector<5x64xf32> to vector<1x64xf32>
    %29 = vector.broadcast %28 : vector<1x64xf32> to vector<24x64xf32>
    %30 = arith.mulf %8, %29 : vector<24x64xf32>
    %31 = arith.addf %27, %30 : vector<24x64xf32>
    %32 = vector.extract_strided_slice %16 {offsets = [4, 0], sizes = [1, 64], strides = [1, 1]} : vector<5x64xf32> to vector<1x64xf32>
    %33 = vector.broadcast %32 : vector<1x64xf32> to vector<24x64xf32>
    %34 = arith.mulf %11, %33 : vector<24x64xf32>
    %35 = arith.addf %31, %34 : vector<24x64xf32>
    %36 = vector.extract_strided_slice %35 {offsets = [0, 0], sizes = [24, 32], strides = [1, 1]} : vector<24x64xf32> to vector<24x32xf32>
    %cst_26 = arith.constant dense<0.000000e+00> : vector<24xf32>
    %37 = vector.multi_reduction <add>, %36, %cst_26 [1] : vector<24x32xf32> to vector<24xf32>
    %38 = vector.shape_cast %37 : vector<24xf32> to vector<24x1xf32>
    %cst_27 = arith.constant 0.000000e+00 : f32
    %39 = vector.broadcast %cst_27 : f32 to vector<24x1xf32>
    %40 = arith.cmpf ogt, %38, %39 : vector<24x1xf32>
    %cst_28 = arith.constant 0.00999999977 : f32
    %41 = vector.broadcast %cst_28 : f32 to vector<24x1xf32>
    %42 = arith.mulf %41, %38 : vector<24x1xf32>
    %43 = arith.select %40, %38, %42 : vector<24x1xi1>, vector<24x1xf32>
    %cst_29 = arith.constant 5.000000e-01 : f32
    %44 = vector.broadcast %cst_29 : f32 to vector<24x8xf32>
    %45 = arith.cmpf ogt, %13, %44 : vector<24x8xf32>
    %cst_30 = arith.constant -1.000000e+30 : f32
    %46 = vector.shape_cast %43 : vector<24x1xf32> to vector<24x1xf32>
    %47 = vector.broadcast %46 : vector<24x1xf32> to vector<24x8xf32>
    %48 = vector.broadcast %cst_30 : f32 to vector<24x8xf32>
    %49 = arith.select %45, %47, %48 : vector<24x8xi1>, vector<24x8xf32>
    %cst_31 = arith.constant dense<0xFF800000> : vector<8xf32>
    %50 = vector.multi_reduction <maximumf>, %49, %cst_31 [0] : vector<24x8xf32> to vector<8xf32>
    %51 = vector.shape_cast %50 : vector<8xf32> to vector<1x8xf32>
    %52 = vector.broadcast %51 : vector<1x8xf32> to vector<24x8xf32>
    %53 = arith.subf %49, %52 : vector<24x8xf32>
    %54 = math.exp %53 : vector<24x8xf32>
    %55 = arith.mulf %54, %13 : vector<24x8xf32>
    %cst_32 = arith.constant dense<0.000000e+00> : vector<8xf32>
    %56 = vector.multi_reduction <add>, %55, %cst_32 [0] : vector<24x8xf32> to vector<8xf32>
    %57 = vector.shape_cast %56 : vector<8xf32> to vector<1x8xf32>
    %cst_33 = arith.constant 0.000000e+00 : f32
    %58 = vector.broadcast %cst_33 : f32 to vector<1x8xf32>
    %59 = arith.cmpf ogt, %57, %58 : vector<1x8xf32>
    %cst_34 = arith.constant 1.000000e+00 : f32
    %60 = vector.broadcast %cst_34 : f32 to vector<1x8xf32>
    %61 = arith.select %59, %57, %60 : vector<1x8xi1>, vector<1x8xf32>
    %62 = vector.broadcast %61 : vector<1x8xf32> to vector<24x8xf32>
    %63 = arith.divf %55, %62 : vector<24x8xf32>
    %cst_35 = arith.constant dense<0.000000e+00> : vector<24xf32>
    %64 = vector.multi_reduction <add>, %63, %cst_35 [1] : vector<24x8xf32> to vector<24xf32>
    %65 = vector.shape_cast %64 : vector<24xf32> to vector<24x1xf32>
    %66 = vector.extract_strided_slice %14 {offsets = [0, 0], sizes = [24, 32], strides = [1, 1]} : vector<24x64xf32> to vector<24x32xf32>
    %67 = vector.broadcast %65 : vector<24x1xf32> to vector<24x32xf32>
    %68 = arith.mulf %67, %66 : vector<24x32xf32>
    %69 = vector.extract_strided_slice %35 {offsets = [0, 32], sizes = [24, 32], strides = [1, 1]} : vector<24x64xf32> to vector<24x32xf32>
    %cst_36 = arith.constant dense<0.000000e+00> : vector<24xf32>
    %70 = vector.multi_reduction <add>, %69, %cst_36 [1] : vector<24x32xf32> to vector<24xf32>
    %71 = vector.shape_cast %70 : vector<24xf32> to vector<24x1xf32>
    %cst_37 = arith.constant 0.000000e+00 : f32
    %72 = vector.broadcast %cst_37 : f32 to vector<24x1xf32>
    %73 = arith.cmpf ogt, %71, %72 : vector<24x1xf32>
    %cst_38 = arith.constant 0.00999999977 : f32
    %74 = vector.broadcast %cst_38 : f32 to vector<24x1xf32>
    %75 = arith.mulf %74, %71 : vector<24x1xf32>
    %76 = arith.select %73, %71, %75 : vector<24x1xi1>, vector<24x1xf32>
    %cst_39 = arith.constant 5.000000e-01 : f32
    %77 = vector.broadcast %cst_39 : f32 to vector<24x8xf32>
    %78 = arith.cmpf ogt, %13, %77 : vector<24x8xf32>
    %cst_40 = arith.constant -1.000000e+30 : f32
    %79 = vector.shape_cast %76 : vector<24x1xf32> to vector<24x1xf32>
    %80 = vector.broadcast %79 : vector<24x1xf32> to vector<24x8xf32>
    %81 = vector.broadcast %cst_40 : f32 to vector<24x8xf32>
    %82 = arith.select %78, %80, %81 : vector<24x8xi1>, vector<24x8xf32>
    %cst_41 = arith.constant dense<0xFF800000> : vector<8xf32>
    %83 = vector.multi_reduction <maximumf>, %82, %cst_41 [0] : vector<24x8xf32> to vector<8xf32>
    %84 = vector.shape_cast %83 : vector<8xf32> to vector<1x8xf32>
    %85 = vector.broadcast %84 : vector<1x8xf32> to vector<24x8xf32>
    %86 = arith.subf %82, %85 : vector<24x8xf32>
    %87 = math.exp %86 : vector<24x8xf32>
    %88 = arith.mulf %87, %13 : vector<24x8xf32>
    %cst_42 = arith.constant dense<0.000000e+00> : vector<8xf32>
    %89 = vector.multi_reduction <add>, %88, %cst_42 [0] : vector<24x8xf32> to vector<8xf32>
    %90 = vector.shape_cast %89 : vector<8xf32> to vector<1x8xf32>
    %cst_43 = arith.constant 0.000000e+00 : f32
    %91 = vector.broadcast %cst_43 : f32 to vector<1x8xf32>
    %92 = arith.cmpf ogt, %90, %91 : vector<1x8xf32>
    %cst_44 = arith.constant 1.000000e+00 : f32
    %93 = vector.broadcast %cst_44 : f32 to vector<1x8xf32>
    %94 = arith.select %92, %90, %93 : vector<1x8xi1>, vector<1x8xf32>
    %95 = vector.broadcast %94 : vector<1x8xf32> to vector<24x8xf32>
    %96 = arith.divf %88, %95 : vector<24x8xf32>
    %cst_45 = arith.constant dense<0.000000e+00> : vector<24xf32>
    %97 = vector.multi_reduction <add>, %96, %cst_45 [1] : vector<24x8xf32> to vector<24xf32>
    %98 = vector.shape_cast %97 : vector<24xf32> to vector<24x1xf32>
    %99 = vector.extract_strided_slice %14 {offsets = [0, 32], sizes = [24, 32], strides = [1, 1]} : vector<24x64xf32> to vector<24x32xf32>
    %100 = vector.broadcast %98 : vector<24x1xf32> to vector<24x32xf32>
    %101 = arith.mulf %100, %99 : vector<24x32xf32>
    %102 = tpu.concatenate %68, %101 in 1 : vector<24x32xf32>, vector<24x32xf32> -> vector<24x64xf32>
    %cst_46 = arith.constant dense<0.000000e+00> : vector<8x64xf32>
    %103 = tpu.matmul %13, %102, %cst_46 {dimension_numbers = #tpu.dot_dimension_numbers<[0], [0], [1], [1], [0, 1, 1, 1], [], []>} : vector<24x8xf32>, vector<24x64xf32>, vector<8x64xf32> -> vector<8x64xf32>
    %c0_47 = arith.constant 0 : index
    %c0_48 = arith.constant 0 : index
    %104 = vector.load %arg11[%c0_47, %c0_48] : memref<8x64xf32, #tpu.memory_space<vmem>>, vector<8x64xf32>
    tpu.vector_store %arg11[%c0_47, %c0_48], %103 {strides = array<i32>} : memref<8x64xf32, #tpu.memory_space<vmem>>, vector<8x64xf32>,
    return
  }
}

</mosaic_0001>

<llo_original>
// kernel: tpu_custom_call.1
$region0: #{tpu_custom_call.1}
  #allocation0 [shape = 'u32[]', space=smem, size = 0x4, offset = 0x4, fixed_abs, tag = 'smem constant byte address 0x4 - core index']
  #allocation1 [shape = 'u32[144,128]{1,0:T(1,128)}', space=vmem, size = 0x12000, scoped, tag = 'internal scratch']
  %s0 = inlined_call_operand.vmem [shape: f32[8,16], index: 0, kind: input, shape index: {}]
  %s1 = inlined_call_operand.vmem [shape: f32[24,8], index: 1, kind: input, shape index: {}]
  %s2 = inlined_call_operand.vmem [shape: f32[24,4], index: 2, kind: input, shape index: {}]
  %s3 = inlined_call_operand.vmem [shape: f32[24,4], index: 3, kind: input, shape index: {}]
  %s4 = inlined_call_operand.vmem [shape: f32[24,8], index: 4, kind: input, shape index: {}]
  %s5 = inlined_call_operand.vmem [shape: f32[24,8], index: 5, kind: input, shape index: {}]
  %s6 = inlined_call_operand.vmem [shape: f32[16,64], index: 6, kind: input, shape index: {}]
  %s7 = inlined_call_operand.vmem [shape: f32[8,64], index: 7, kind: input, shape index: {}]
  %s8 = inlined_call_operand.vmem [shape: f32[4,64], index: 8, kind: input, shape index: {}]
  %s9 = inlined_call_operand.vmem [shape: f32[4,64], index: 9, kind: input, shape index: {}]
  %s10 = inlined_call_operand.vmem [shape: f32[5,64], index: 10, kind: input, shape index: {}]
  %s11 = inlined_call_operand.hbm [shape: f32[8,64], index: 11, kind: output, shape index: {}]
  %s12 = sld [smem:[#allocation0]]
  $region54: #{tpu_custom_call.1} parent=0
    _
  %s14 = ssub.s32 1, %s12
  %s15 = scalar_select 0, %s14, %s12
  $region1: #{tpu_custom_call.1} parent=0
    #allocation2 [shape = 'u8[4096]{0}', space=vmem, size = 0x1000, scoped, tag = 'output window, operand 0, single buffered']
    #allocation3 [shape = 's32[1]{0}', space=sflag, size = 0x4, scoped, tag = 'scoped memory for tpu_custom_call.1']
    %16 = vsyncpa [#allocation3], 0
    // Predicated region
    $region2: #{tpu_custom_call.1} parent=1 // pred_check
      _
    $region3: #{tpu_custom_call.1} parent=1 // pred_check_branch
      %18 = sbr.rel (0) target = $region5
    $region4: #{tpu_custom_call.1} parent=1 // pred_region
      _
    $region5: #{tpu_custom_call.1} parent=1 // pred_fallthru
      _
    // Predicated region
    $region6: #{tpu_custom_call.1} parent=1 // pred_check
      _
    $region7: #{tpu_custom_call.1} parent=1 // pred_check_branch
      %20 = sbr.rel (0) target = $region9
    $region8: #{tpu_custom_call.1} parent=1 // pred_region
      _
    $region9: #{tpu_custom_call.1} parent=1 // pred_fallthru
      _
    // Predicated region
    $region10: #{tpu_custom_call.1} parent=1 // pred_check
      _
    $region11: #{tpu_custom_call.1} parent=1 // pred_check_branch
      %22 = sbr.rel (0) target = $region13
    $region12: #{tpu_custom_call.1} parent=1 // pred_region
      _
    $region13: #{tpu_custom_call.1} parent=1 // pred_fallthru
      _
    // Predicated region
    $region14: #{tpu_custom_call.1} parent=1 // pred_check
      _
    $region15: #{tpu_custom_call.1} parent=1 // pred_check_branch
      %24 = sbr.rel (0) target = $region17
    $region16: #{tpu_custom_call.1} parent=1 // pred_region
      _
    $region17: #{tpu_custom_call.1} parent=1 // pred_fallthru
      _
    // Predicated region
    $region18: #{tpu_custom_call.1} parent=1 // pred_check
      _
    $region19: #{tpu_custom_call.1} parent=1 // pred_check_branch
      %26 = sbr.rel (0) target = $region21
    $region20: #{tpu_custom_call.1} parent=1 // pred_region
      _
    $region21: #{tpu_custom_call.1} parent=1 // pred_fallthru
      _
    // Predicated region
    $region22: #{tpu_custom_call.1} parent=1 // pred_check
      _
    $region23: #{tpu_custom_call.1} parent=1 // pred_check_branch
      %28 = sbr.rel (0) target = $region25
    $region24: #{tpu_custom_call.1} parent=1 // pred_region
      _
    $region25: #{tpu_custom_call.1} parent=1 // pred_fallthru
      _
    // Predicated region
    $region26: #{tpu_custom_call.1} parent=1 // pred_check
      _
    $region27: #{tpu_custom_call.1} parent=1 // pred_check_branch
      %30 = sbr.rel (0) target = $region29
    $region28: #{tpu_custom_call.1} parent=1 // pred_region
      _
    $region29: #{tpu_custom_call.1} parent=1 // pred_fallthru
      _
    // Predicated region
    $region30: #{tpu_custom_call.1} parent=1 // pred_check
      _
    $region31: #{tpu_custom_call.1} parent=1 // pred_check_branch
      %32 = sbr.rel (0) target = $region33
    $region32: #{tpu_custom_call.1} parent=1 // pred_region
      _
    $region33: #{tpu_custom_call.1} parent=1 // pred_fallthru
      _
    // Predicated region
    $region34: #{tpu_custom_call.1} parent=1 // pred_check
      _
    $region35: #{tpu_custom_call.1} parent=1 // pred_check_branch
      %34 = sbr.rel (0) target = $region37
    $region36: #{tpu_custom_call.1} parent=1 // pred_region
      _
    $region37: #{tpu_custom_call.1} parent=1 // pred_fallthru
      _
    // Predicated region
    $region38: #{tpu_custom_call.1} parent=1 // pred_check
      _
    $region39: #{tpu_custom_call.1} parent=1 // pred_check_branch
      %36 = sbr.rel (0) target = $region41
    $region40: #{tpu_custom_call.1} parent=1 // pred_region
      _
    $region41: #{tpu_custom_call.1} parent=1 // pred_fallthru
      _
    // Predicated region
    $region42: #{tpu_custom_call.1} parent=1 // pred_check
      _
    $region43: #{tpu_custom_call.1} parent=1 // pred_check_branch
      %38 = sbr.rel (0) target = $region45
    $region44: #{tpu_custom_call.1} parent=1 // pred_region
      _
    $region45: #{tpu_custom_call.1} parent=1 // pred_fallthru
      _
    %v39 = vld [vmem:[%s0] sm:$0xff]
    %v40 = vld [vmem:[%s6] sm:$0xff]
    %v41 = vld [vmem:[%s6 + $0x8] sm:$0xff]
    %vm42 = vcmask 130048
    %v44 = vsel %vm42, %v39, 0
    %46 = vmatprep.subr.mxu0 0.0
    %47 = vmatpush1.msra.mxu0 0.0
    %48 = vmatprep.subr.mxu0 0.0
    %49 = vmatpush1.msra.mxu0 0.0
    %50 = vmatprep.subr.mxu0 0.0
    %51 = vmatpush1.msra.mxu0 0.0
    %52 = vmatprep.subr.mxu0 0.0
    %53 = vmatpush1.msra.mxu0 0.0
    %54 = vmatprep.subr.mxu0 0.0
    %55 = vmatpush1.msra.mxu0 0.0
    %56 = vmatprep.subr.mxu0 0.0
    %57 = vmatpush1.msra.mxu0 0.0
    %58 = vmatprep.subr.mxu0 0.0
    %59 = vmatpush1.msra.mxu0 0.0
    %60 = vmatprep.subr.mxu0 0.0
    %61 = vmatpush1.msra.mxu0 0.0
    %62 = vmatprep.subr.mxu0 0.0
    %63 = vmatpush1.msra.mxu0 0.0
    %64 = vmatprep.subr.mxu0 0.0
    %65 = vmatpush1.msra.mxu0 0.0
    %66 = vmatprep.subr.mxu0 0.0
    %67 = vmatpush1.msra.mxu0 0.0
    %68 = vmatprep.subr.mxu0 0.0
    %69 = vmatpush1.msra.mxu0 0.0
    %70 = vmatprep.subr.mxu0 0.0
    %71 = vmatpush1.msra.mxu0 0.0
    %72 = vmatprep.subr.mxu0 0.0
    %73 = vmatpush1.msra.mxu0 0.0
    %74 = vmatprep.subr.mxu0 0.0
    %75 = vmatpush1.msra.mxu0 %v41
    %76 = vmatprep.subr.mxu0 0.0
    %77 = vmatpush1.msra.mxu0 %v40
    %78 = vmatprep.subr.mxu0 0.0
    %79 = vmatpush2.msra.mxu0 0.0
    %80 = vmatprep.subr.mxu0 0.0
    %81 = vmatpush2.msra.mxu0 0.0
    %82 = vmatprep.subr.mxu0 0.0
    %83 = vmatpush2.msra.mxu0 0.0
    %84 = vmatprep.subr.mxu0 0.0
    %85 = vmatpush2.msra.mxu0 0.0
    %86 = vmatprep.subr.mxu0 0.0
    %87 = vmatpush2.msra.mxu0 0.0
    %88 = vmatprep.subr.mxu0 0.0
    %89 = vmatpush2.msra.mxu0 0.0
    %90 = vmatprep.subr.mxu0 0.0
    %91 = vmatpush2.msra.mxu0 0.0
    %92 = vmatprep.subr.mxu0 0.0
    %93 = vmatpush2.msra.mxu0 0.0
    %94 = vmatprep.subr.mxu0 0.0
    %95 = vmatpush2.msra.mxu0 0.0
    %96 = vmatprep.subr.mxu0 0.0
    %97 = vmatpush2.msra.mxu0 0.0
    %98 = vmatprep.subr.mxu0 0.0
    %99 = vmatpush2.msra.mxu0 0.0
    %100 = vmatprep.subr.mxu0 0.0
    %101 = vmatpush2.msra.mxu0 0.0
    %102 = vmatprep.subr.mxu0 0.0
    %103 = vmatpush2.msra.mxu0 0.0
    %104 = vmatprep.subr.mxu0 0.0
    %105 = vmatpush2.msra.mxu0 0.0
    %106 = vmatprep.subr.mxu0 0.0
    %107 = vmatpush2.msra.mxu0 0.0
    %108 = vmatprep.subr.mxu0 0.0
    %109 = vmatpush2.msra.mxu0 0.0
    %110 = vmatprep.mubr.f32.mxu0 0.0
    %111 = vmatmul.mubr.f32.gmra.mxu0 %v44
    %v112 = vpop.f32.mrf.mxu0
    %v113 = vadd.f32 0.0, %v112
    %v114 = vpop.f32.mrf.mxu0
    %115 = vdwg.mxu0
    %v116 = vld [vmem:[%s1] sm:$0xff]
    %v117 = vld [vmem:[%s1 + $0x8] sm:$0xff]
    %v118 = vld [vmem:[%s1 + $0x10] sm:$0xff]
    %v119 = vld [vmem:[%s7] sm:$0xff]
    %vm120 = vcmask 64512
    %v122 = vsel %vm120, %v116, 0
    %v125 = vsel %vm120, %v117, 0
    %v128 = vsel %vm120, %v118, 0
    %130 = vmatprep.subr.mxu0 0.0
    %131 = vmatpush1.msra.mxu0 0.0
    %132 = vmatprep.subr.mxu0 0.0
    %133 = vmatpush1.msra.mxu0 0.0
    %134 = vmatprep.subr.mxu0 0.0
    %135 = vmatpush1.msra.mxu0 0.0
    %136 = vmatprep.subr.mxu0 0.0
    %137 = vmatpush1.msra.mxu0 0.0
    %138 = vmatprep.subr.mxu0 0.0
    %139 = vmatpush1.msra.mxu0 0.0
    %140 = vmatprep.subr.mxu0 0.0
    %141 = vmatpush1.msra.mxu0 0.0
    %142 = vmatprep.subr.mxu0 0.0
    %143 = vmatpush1.msra.mxu0 0.0
    %144 = vmatprep.subr.mxu0 0.0
    %145 = vmatpush1.msra.mxu0 0.0
    %146 = vmatprep.subr.mxu0 0.0
    %147 = vmatpush1.msra.mxu0 0.0
    %148 = vmatprep.subr.mxu0 0.0
    %149 = vmatpush1.msra.mxu0 0.0
    %150 = vmatprep.subr.mxu0 0.0
    %151 = vmatpush1.msra.mxu0 0.0
    %152 = vmatprep.subr.mxu0 0.0
    %153 = vmatpush1.msra.mxu0 0.0
    %154 = vmatprep.subr.mxu0 0.0
    %155 = vmatpush1.msra.mxu0 0.0
    %156 = vmatprep.subr.mxu0 0.0
    %157 = vmatpush1.msra.mxu0 0.0
    %158 = vmatprep.subr.mxu0 0.0
    %159 = vmatpush1.msra.mxu0 0.0
    %160 = vmatprep.subr.mxu0 0.0
    %161 = vmatpush1.msra.mxu0 %v119
    %162 = vmatprep.subr.mxu0 0.0
    %163 = vmatpush2.msra.mxu0 0.0
    %164 = vmatprep.subr.mxu0 0.0
    %165 = vmatpush2.msra.mxu0 0.0
    %166 = vmatprep.subr.mxu0 0.0
    %167 = vmatpush2.msra.mxu0 0.0
    %168 = vmatprep.subr.mxu0 0.0
    %169 = vmatpush2.msra.mxu0 0.0
    %170 = vmatprep.subr.mxu0 0.0
    %171 = vmatpush2.msra.mxu0 0.0
    %172 = vmatprep.subr.mxu0 0.0
    %173 = vmatpush2.msra.mxu0 0.0
    %174 = vmatprep.subr.mxu0 0.0
    %175 = vmatpush2.msra.mxu0 0.0
    %176 = vmatprep.subr.mxu0 0.0
    %177 = vmatpush2.msra.mxu0 0.0
    %178 = vmatprep.subr.mxu0 0.0
    %179 = vmatpush2.msra.mxu0 0.0
    %180 = vmatprep.subr.mxu0 0.0
    %181 = vmatpush2.msra.mxu0 0.0
    %182 = vmatprep.subr.mxu0 0.0
    %183 = vmatpush2.msra.mxu0 0.0
    %184 = vmatprep.subr.mxu0 0.0
    %185 = vmatpush2.msra.mxu0 0.0
    %186 = vmatprep.subr.mxu0 0.0
    %187 = vmatpush2.msra.mxu0 0.0
    %188 = vmatprep.subr.mxu0 0.0
    %189 = vmatpush2.msra.mxu0 0.0
    %190 = vmatprep.subr.mxu0 0.0
    %191 = vmatpush2.msra.mxu0 0.0
    %192 = vmatprep.subr.mxu0 0.0
    %193 = vmatpush2.msra.mxu0 0.0
    %194 = vmatprep.mubr.f32.mxu0 0.0
    %195 = vmatmul.mubr.f32.gmra.mxu0 %v122
    %v196 = vpop.f32.mrf.mxu0
    %v197 = vadd.f32 0.0, %v196
    %v198 = vpop.f32.mrf.mxu0
    %199 = vmatprep.mubr.f32.mxu0 0.0
    %200 = vmatmul.mubr.f32.gmra.mxu0 %v125
    %v201 = vpop.f32.mrf.mxu0
    %v202 = vadd.f32 0.0, %v201
    %v203 = vpop.f32.mrf.mxu0
    %204 = vmatprep.mubr.f32.mxu0 0.0
    %205 = vmatmul.mubr.f32.gmra.mxu0 %v128
    %v206 = vpop.f32.mrf.mxu0
    %v207 = vadd.f32 0.0, %v206
    %v208 = vpop.f32.mrf.mxu0
    %209 = vdwg.mxu0
    %v210 = vld [vmem:[%s2] sm:$0xff]
    %v211 = vld [vmem:[%s2 + $0x8] sm:$0xff]
    %v212 = vld [vmem:[%s2 + $0x10] sm:$0xff]
    %v213 = vld [vmem:[%s8] sm:$0xf]
    %vm214 = vcmask 31744
    %v216 = vsel %vm214, %v210, 0
    %v219 = vsel %vm214, %v211, 0
    %v222 = vsel %vm214, %v212, 0
    %vm224 = vcmask 1043456
    %v226 = vsel %vm224, %v213, 0
    %228 = vmatprep.subr.mxu0 0.0
    %229 = vmatpush1.msra.mxu0 0.0
    %230 = vmatprep.subr.mxu0 0.0
    %231 = vmatpush1.msra.mxu0 0.0
    %232 = vmatprep.subr.mxu0 0.0
    %233 = vmatpush1.msra.mxu0 0.0
    %234 = vmatprep.subr.mxu0 0.0
    %235 = vmatpush1.msra.mxu0 0.0
    %236 = vmatprep.subr.mxu0 0.0
    %237 = vmatpush1.msra.mxu0 0.0
    %238 = vmatprep.subr.mxu0 0.0
    %239 = vmatpush1.msra.mxu0 0.0
    %240 = vmatprep.subr.mxu0 0.0
    %241 = vmatpush1.msra.mxu0 0.0
    %242 = vmatprep.subr.mxu0 0.0
    %243 = vmatpush1.msra.mxu0 0.0
    %244 = vmatprep.subr.mxu0 0.0
    %245 = vmatpush1.msra.mxu0 0.0
    %246 = vmatprep.subr.mxu0 0.0
    %247 = vmatpush1.msra.mxu0 0.0
    %248 = vmatprep.subr.mxu0 0.0
    %249 = vmatpush1.msra.mxu0 0.0
    %250 = vmatprep.subr.mxu0 0.0
    %251 = vmatpush1.msra.mxu0 0.0
    %252 = vmatprep.subr.mxu0 0.0
    %253 = vmatpush1.msra.mxu0 0.0
    %254 = vmatprep.subr.mxu0 0.0
    %255 = vmatpush1.msra.mxu0 0.0
    %256 = vmatprep.subr.mxu0 0.0
    %257 = vmatpush1.msra.mxu0 0.0
    %258 = vmatprep.subr.mxu0 0.0
    %259 = vmatpush1.msra.mxu0 %v226
    %260 = vmatprep.subr.mxu0 0.0
    %261 = vmatpush2.msra.mxu0 0.0
    %262 = vmatprep.subr.mxu0 0.0
    %263 = vmatpush2.msra.mxu0 0.0
    %264 = vmatprep.subr.mxu0 0.0
    %265 = vmatpush2.msra.mxu0 0.0
    %266 = vmatprep.subr.mxu0 0.0
    %267 = vmatpush2.msra.mxu0 0.0
    %268 = vmatprep.subr.mxu0 0.0
    %269 = vmatpush2.msra.mxu0 0.0
    %270 = vmatprep.subr.mxu0 0.0
    %271 = vmatpush2.msra.mxu0 0.0
    %272 = vmatprep.subr.mxu0 0.0
    %273 = vmatpush2.msra.mxu0 0.0
    %274 = vmatprep.subr.mxu0 0.0
    %275 = vmatpush2.msra.mxu0 0.0
    %276 = vmatprep.subr.mxu0 0.0
    %277 = vmatpush2.msra.mxu0 0.0
    %278 = vmatprep.subr.mxu0 0.0
    %279 = vmatpush2.msra.mxu0 0.0
    %280 = vmatprep.subr.mxu0 0.0
    %281 = vmatpush2.msra.mxu0 0.0
    %282 = vmatprep.subr.mxu0 0.0
    %283 = vmatpush2.msra.mxu0 0.0
    %284 = vmatprep.subr.mxu0 0.0
    %285 = vmatpush2.msra.mxu0 0.0
    %286 = vmatprep.subr.mxu0 0.0
    %287 = vmatpush2.msra.mxu0 0.0
    %288 = vmatprep.subr.mxu0 0.0
    %289 = vmatpush2.msra.mxu0 0.0
    %290 = vmatprep.subr.mxu0 0.0
    %291 = vmatpush2.msra.mxu0 0.0
    %292 = vmatprep.mubr.f32.mxu0 0.0
    %293 = vmatmul.mubr.f32.gmra.mxu0 %v216
    %v294 = vpop.f32.mrf.mxu0
    %v295 = vadd.f32 0.0, %v294
    %v296 = vpop.f32.mrf.mxu0
    %297 = vmatprep.mubr.f32.mxu0 0.0
    %298 = vmatmul.mubr.f32.gmra.mxu0 %v219
    %v299 = vpop.f32.mrf.mxu0
    %v300 = vadd.f32 0.0, %v299
    %v301 = vpop.f32.mrf.mxu0
    %302 = vmatprep.mubr.f32.mxu0 0.0
    %303 = vmatmul.mubr.f32.gmra.mxu0 %v222
    %v304 = vpop.f32.mrf.mxu0
    %v305 = vadd.f32 0.0, %v304
    %v306 = vpop.f32.mrf.mxu0
    %307 = vdwg.mxu0
    %v308 = vld [vmem:[%s3] sm:$0xff]
    %v309 = vld [vmem:[%s3 + $0x8] sm:$0xff]
    %v310 = vld [vmem:[%s3 + $0x10] sm:$0xff]
    %v311 = vld [vmem:[%s9] sm:$0xf]
    %v313 = vsel %vm214, %v308, 0
    %v316 = vsel %vm214, %v309, 0
    %v319 = vsel %vm214, %v310, 0
    %v322 = vsel %vm224, %v311, 0
    %324 = vmatprep.subr.mxu0 0.0
    %325 = vmatpush1.msra.mxu0 0.0
    %326 = vmatprep.subr.mxu0 0.0
    %327 = vmatpush1.msra.mxu0 0.0
    %328 = vmatprep.subr.mxu0 0.0
    %329 = vmatpush1.msra.mxu0 0.0
    %330 = vmatprep.subr.mxu0 0.0
    %331 = vmatpush1.msra.mxu0 0.0
    %332 = vmatprep.subr.mxu0 0.0
    %333 = vmatpush1.msra.mxu0 0.0
    %334 = vmatprep.subr.mxu0 0.0
    %335 = vmatpush1.msra.mxu0 0.0
    %336 = vmatprep.subr.mxu0 0.0
    %337 = vmatpush1.msra.mxu0 0.0
    %338 = vmatprep.subr.mxu0 0.0
    %339 = vmatpush1.msra.mxu0 0.0
    %340 = vmatprep.subr.mxu0 0.0
    %341 = vmatpush1.msra.mxu0 0.0
    %342 = vmatprep.subr.mxu0 0.0
    %343 = vmatpush1.msra.mxu0 0.0
    %344 = vmatprep.subr.mxu0 0.0
    %345 = vmatpush1.msra.mxu0 0.0
    %346 = vmatprep.subr.mxu0 0.0
    %347 = vmatpush1.msra.mxu0 0.0
    %348 = vmatprep.subr.mxu0 0.0
    %349 = vmatpush1.msra.mxu0 0.0
    %350 = vmatprep.subr.mxu0 0.0
    %351 = vmatpush1.msra.mxu0 0.0
    %352 = vmatprep.subr.mxu0 0.0
    %353 = vmatpush1.msra.mxu0 0.0
    %354 = vmatprep.subr.mxu0 0.0
    %355 = vmatpush1.msra.mxu0 %v322
    %356 = vmatprep.subr.mxu0 0.0
    %357 = vmatpush2.msra.mxu0 0.0
    %358 = vmatprep.subr.mxu0 0.0
    %359 = vmatpush2.msra.mxu0 0.0
    %360 = vmatprep.subr.mxu0 0.0
    %361 = vmatpush2.msra.mxu0 0.0
    %362 = vmatprep.subr.mxu0 0.0
    %363 = vmatpush2.msra.mxu0 0.0
    %364 = vmatprep.subr.mxu0 0.0
    %365 = vmatpush2.msra.mxu0 0.0
    %366 = vmatprep.subr.mxu0 0.0
    %367 = vmatpush2.msra.mxu0 0.0
    %368 = vmatprep.subr.mxu0 0.0
    %369 = vmatpush2.msra.mxu0 0.0
    %370 = vmatprep.subr.mxu0 0.0
    %371 = vmatpush2.msra.mxu0 0.0
    %372 = vmatprep.subr.mxu0 0.0
    %373 = vmatpush2.msra.mxu0 0.0
    %374 = vmatprep.subr.mxu0 0.0
    %375 = vmatpush2.msra.mxu0 0.0
    %376 = vmatprep.subr.mxu0 0.0
    %377 = vmatpush2.msra.mxu0 0.0
    %378 = vmatprep.subr.mxu0 0.0
    %379 = vmatpush2.msra.mxu0 0.0
    %380 = vmatprep.subr.mxu0 0.0
    %381 = vmatpush2.msra.mxu0 0.0
    %382 = vmatprep.subr.mxu0 0.0
    %383 = vmatpush2.msra.mxu0 0.0
    %384 = vmatprep.subr.mxu0 0.0
    %385 = vmatpush2.msra.mxu0 0.0
    %386 = vmatprep.subr.mxu0 0.0
    %387 = vmatpush2.msra.mxu0 0.0
    %388 = vmatprep.mubr.f32.mxu0 0.0
    %389 = vmatmul.mubr.f32.gmra.mxu0 %v313
    %v390 = vpop.f32.mrf.mxu0
    %v391 = vadd.f32 0.0, %v390
    %v392 = vpop.f32.mrf.mxu0
    %393 = vmatprep.mubr.f32.mxu0 0.0
    %394 = vmatmul.mubr.f32.gmra.mxu0 %v316
    %v395 = vpop.f32.mrf.mxu0
    %v396 = vadd.f32 0.0, %v395
    %v397 = vpop.f32.mrf.mxu0
    %398 = vmatprep.mubr.f32.mxu0 0.0
    %399 = vmatmul.mubr.f32.gmra.mxu0 %v319
    %v400 = vpop.f32.mrf.mxu0
    %v401 = vadd.f32 0.0, %v400
    %v402 = vpop.f32.mrf.mxu0
    %403 = vdwg.mxu0
    %v404 = vld [vmem:[%s4] sm:$0xff]
    %v405 = vld [vmem:[%s4 + $0x8] sm:$0xff]
    %v406 = vld [vmem:[%s4 + $0x10] sm:$0xff]
    %v407 = vld [vmem:[%s5] sm:$0xff]
    %v408 = vld [vmem:[%s5 + $0x8] sm:$0xff]
    %v409 = vld [vmem:[%s5 + $0x10] sm:$0xff]
    %v411 = vsel %vm120, %v404, 0
    %v414 = vsel %vm120, %v405, 0
    %v417 = vsel %vm120, %v406, 0
    %419 = vmatprep.subr.mxu0 0.0
    %420 = vmatpush1.msra.mxu0 0.0
    %421 = vmatprep.subr.mxu0 0.0
    %422 = vmatpush1.msra.mxu0 0.0
    %423 = vmatprep.subr.mxu0 0.0
    %424 = vmatpush1.msra.mxu0 0.0
    %425 = vmatprep.subr.mxu0 0.0
    %426 = vmatpush1.msra.mxu0 0.0
    %427 = vmatprep.subr.mxu0 0.0
    %428 = vmatpush1.msra.mxu0 0.0
    %429 = vmatprep.subr.mxu0 0.0
    %430 = vmatpush1.msra.mxu0 0.0
    %431 = vmatprep.subr.mxu0 0.0
    %432 = vmatpush1.msra.mxu0 0.0
    %433 = vmatprep.subr.mxu0 0.0
    %434 = vmatpush1.msra.mxu0 0.0
    %435 = vmatprep.subr.mxu0 0.0
    %436 = vmatpush1.msra.mxu0 0.0
    %437 = vmatprep.subr.mxu0 0.0
    %438 = vmatpush1.msra.mxu0 0.0
    %439 = vmatprep.subr.mxu0 0.0
    %440 = vmatpush1.msra.mxu0 0.0
    %441 = vmatprep.subr.mxu0 0.0
    %442 = vmatpush1.msra.mxu0 0.0
    %443 = vmatprep.subr.mxu0 0.0
    %444 = vmatpush1.msra.mxu0 0.0
    %445 = vmatprep.subr.mxu0 0.0
    %446 = vmatpush1.msra.mxu0 0.0
    %447 = vmatprep.subr.mxu0 0.0
    %448 = vmatpush1.msra.mxu0 0.0
    %449 = vmatprep.subr.mxu0 0.0
    %450 = vmatpush1.msra.mxu0 %v113
    %451 = vmatprep.subr.mxu0 0.0
    %452 = vmatpush2.msra.mxu0 0.0
    %453 = vmatprep.subr.mxu0 0.0
    %454 = vmatpush2.msra.mxu0 0.0
    %455 = vmatprep.subr.mxu0 0.0
    %456 = vmatpush2.msra.mxu0 0.0
    %457 = vmatprep.subr.mxu0 0.0
    %458 = vmatpush2.msra.mxu0 0.0
    %459 = vmatprep.subr.mxu0 0.0
    %460 = vmatpush2.msra.mxu0 0.0
    %461 = vmatprep.subr.mxu0 0.0
    %462 = vmatpush2.msra.mxu0 0.0
    %463 = vmatprep.subr.mxu0 0.0
    %464 = vmatpush2.msra.mxu0 0.0
    %465 = vmatprep.subr.mxu0 0.0
    %466 = vmatpush2.msra.mxu0 0.0
    %467 = vmatprep.subr.mxu0 0.0
    %468 = vmatpush2.msra.mxu0 0.0
    %469 = vmatprep.subr.mxu0 0.0
    %470 = vmatpush2.msra.mxu0 0.0
    %471 = vmatprep.subr.mxu0 0.0
    %472 = vmatpush2.msra.mxu0 0.0
    %473 = vmatprep.subr.mxu0 0.0
    %474 = vmatpush2.msra.mxu0 0.0
    %475 = vmatprep.subr.mxu0 0.0
    %476 = vmatpush2.msra.mxu0 0.0
    %477 = vmatprep.subr.mxu0 0.0
    %478 = vmatpush2.msra.mxu0 0.0
    %479 = vmatprep.subr.mxu0 0.0
    %480 = vmatpush2.msra.mxu0 0.0
    %481 = vmatprep.subr.mxu0 0.0
    %482 = vmatpush2.msra.mxu0 0.0
    %483 = vmatprep.mubr.f32.mxu0 0.0
    %484 = vmatmul.mubr.f32.gmra.mxu0 %v411
    %v485 = vpop.f32.mrf.mxu0
    %v486 = vadd.f32 0.0, %v485
    %v487 = vpop.f32.mrf.mxu0
    %488 = vmatprep.mubr.f32.mxu0 0.0
    %489 = vmatmul.mubr.f32.gmra.mxu0 %v414
    %v490 = vpop.f32.mrf.mxu0
    %v491 = vadd.f32 0.0, %v490
    %v492 = vpop.f32.mrf.mxu0
    %493 = vmatprep.mubr.f32.mxu0 0.0
    %494 = vmatmul.mubr.f32.gmra.mxu0 %v417
    %v495 = vpop.f32.mrf.mxu0
    %v496 = vadd.f32 0.0, %v495
    %v497 = vpop.f32.mrf.mxu0
    %498 = vdwg.mxu0
    %v500 = vsel %vm120, %v407, 0
    %v503 = vsel %vm120, %v408, 0
    %v506 = vsel %vm120, %v409, 0
    %508 = vmatprep.subr.mxu0 0.0
    %509 = vmatpush1.msra.mxu0 0.0
    %510 = vmatprep.subr.mxu0 0.0
    %511 = vmatpush1.msra.mxu0 0.0
    %512 = vmatprep.subr.mxu0 0.0
    %513 = vmatpush1.msra.mxu0 0.0
    %514 = vmatprep.subr.mxu0 0.0
    %515 = vmatpush1.msra.mxu0 0.0
    %516 = vmatprep.subr.mxu0 0.0
    %517 = vmatpush1.msra.mxu0 0.0
    %518 = vmatprep.subr.mxu0 0.0
    %519 = vmatpush1.msra.mxu0 0.0
    %520 = vmatprep.subr.mxu0 0.0
    %521 = vmatpush1.msra.mxu0 0.0
    %522 = vmatprep.subr.mxu0 0.0
    %523 = vmatpush1.msra.mxu0 0.0
    %524 = vmatprep.subr.mxu0 0.0
    %525 = vmatpush1.msra.mxu0 0.0
    %526 = vmatprep.subr.mxu0 0.0
    %527 = vmatpush1.msra.mxu0 0.0
    %528 = vmatprep.subr.mxu0 0.0
    %529 = vmatpush1.msra.mxu0 0.0
    %530 = vmatprep.subr.mxu0 0.0
    %531 = vmatpush1.msra.mxu0 0.0
    %532 = vmatprep.subr.mxu0 0.0
    %533 = vmatpush1.msra.mxu0 0.0
    %534 = vmatprep.subr.mxu0 0.0
    %535 = vmatpush1.msra.mxu0 0.0
    %536 = vmatprep.subr.mxu0 0.0
    %537 = vmatpush1.msra.mxu0 0.0
    %538 = vmatprep.subr.mxu0 0.0
    %539 = vmatpush1.msra.mxu0 %v113
    %540 = vmatprep.subr.mxu0 0.0
    %541 = vmatpush2.msra.mxu0 0.0
    %542 = vmatprep.subr.mxu0 0.0
    %543 = vmatpush2.msra.mxu0 0.0
    %544 = vmatprep.subr.mxu0 0.0
    %545 = vmatpush2.msra.mxu0 0.0
    %546 = vmatprep.subr.mxu0 0.0
    %547 = vmatpush2.msra.mxu0 0.0
    %548 = vmatprep.subr.mxu0 0.0
    %549 = vmatpush2.msra.mxu0 0.0
    %550 = vmatprep.subr.mxu0 0.0
    %551 = vmatpush2.msra.mxu0 0.0
    %552 = vmatprep.subr.mxu0 0.0
    %553 = vmatpush2.msra.mxu0 0.0
    %554 = vmatprep.subr.mxu0 0.0
    %555 = vmatpush2.msra.mxu0 0.0
    %556 = vmatprep.subr.mxu0 0.0
    %557 = vmatpush2.msra.mxu0 0.0
    %558 = vmatprep.subr.mxu0 0.0
    %559 = vmatpush2.msra.mxu0 0.0
    %560 = vmatprep.subr.mxu0 0.0
    %561 = vmatpush2.msra.mxu0 0.0
    %562 = vmatprep.subr.mxu0 0.0
    %563 = vmatpush2.msra.mxu0 0.0
    %564 = vmatprep.subr.mxu0 0.0
    %565 = vmatpush2.msra.mxu0 0.0
    %566 = vmatprep.subr.mxu0 0.0
    %567 = vmatpush2.msra.mxu0 0.0
    %568 = vmatprep.subr.mxu0 0.0
    %569 = vmatpush2.msra.mxu0 0.0
    %570 = vmatprep.subr.mxu0 0.0
    %571 = vmatpush2.msra.mxu0 0.0
    %572 = vmatprep.mubr.f32.mxu0 0.0
    %573 = vmatmul.mubr.f32.gmra.mxu0 %v500
    %v574 = vpop.f32.mrf.mxu0
    %v575 = vadd.f32 0.0, %v574
    %v576 = vpop.f32.mrf.mxu0
    %577 = vmatprep.mubr.f32.mxu0 0.0
    %578 = vmatmul.mubr.f32.gmra.mxu0 %v503
    %v579 = vpop.f32.mrf.mxu0
    %v580 = vadd.f32 0.0, %v579
    %v581 = vpop.f32.mrf.mxu0
    %582 = vmatprep.mubr.f32.mxu0 0.0
    %583 = vmatmul.mubr.f32.gmra.mxu0 %v506
    %v584 = vpop.f32.mrf.mxu0
    %v585 = vadd.f32 0.0, %v584
    %v586 = vpop.f32.mrf.mxu0
    %587 = vdwg.mxu0
    %v588 = vld [vmem:[%s10] sm:$0x1f]
    %v589 = vlaneseq
    %v590 = vshrl.u32 %v589, 7
    %v591 = vsub.s32 0, %v590
    %v592 = vrot.slane %v588, %v591
    %v593 = vmul.f32 %v486, %v592
    %v594 = vmul.f32 %v491, %v592
    %v595 = vmul.f32 %v496, %v592
    %v596 = vlaneseq
    %v597 = vshrl.u32 %v596, 7
    %v598 = vsub.s32 1, %v597
    %v599 = vrot.slane %v588, %v598
    %v600 = vmul.f32 %v575, %v599
    %v601 = vmul.f32 %v580, %v599
    %v602 = vmul.f32 %v585, %v599
    %v603 = vadd.f32 %v593, %v600
    %v604 = vadd.f32 %v594, %v601
    %v605 = vadd.f32 %v595, %v602
    %v606 = vlaneseq
    %v607 = vshrl.u32 %v606, 7
    %v608 = vsub.s32 2, %v607
    %v609 = vrot.slane %v588, %v608
    %v610 = vmul.f32 %v197, %v609
    %v611 = vmul.f32 %v202, %v609
    %v612 = vmul.f32 %v207, %v609
    %v613 = vadd.f32 %v603, %v610
    %v614 = vadd.f32 %v604, %v611
    %v615 = vadd.f32 %v605, %v612
    %v616 = vlaneseq
    %v617 = vshrl.u32 %v616, 7
    %v618 = vsub.s32 3, %v617
    %v619 = vrot.slane %v588, %v618
    %v620 = vmul.f32 %v295, %v619
    %v621 = vmul.f32 %v300, %v619
    %v622 = vmul.f32 %v305, %v619
    %v623 = vadd.f32 %v613, %v620
    %v624 = vadd.f32 %v614, %v621
    %v625 = vadd.f32 %v615, %v622
    %v626 = vlaneseq
    %v627 = vshrl.u32 %v626, 7
    %v628 = vsub.s32 4, %v627
    %v629 = vrot.slane %v588, %v628
    %v630 = vmul.f32 %v391, %v629
    %v631 = vmul.f32 %v396, %v629
    %v632 = vmul.f32 %v401, %v629
    %v633 = vadd.f32 %v623, %v630
    %v634 = vadd.f32 %v624, %v631
    %v635 = vadd.f32 %v625, %v632
    %vm636 = vcmask 261120
    %v637 = vsel %vm636, %v633, 0.0
    %638 = vadd.xlane.f32.xlu0 %v637
    %v639 = vpop.xlane.xlu0 %638
    %v640 = vsel %vm636, %v634, 0.0
    %641 = vadd.xlane.f32.xlu0 %v640
    %v642 = vpop.xlane.xlu0 %641
    %v643 = vsel %vm636, %v635, 0.0
    %644 = vadd.xlane.f32.xlu0 %v643
    %v645 = vpop.xlane.xlu0 %644
    %vm646 = vcmp.gt.f32.partialorder %v639, 0.0
    %vm647 = vcmp.gt.f32.partialorder %v642, 0.0
    %vm648 = vcmp.gt.f32.partialorder %v645, 0.0
    %v649 = vmul.f32 %v639, 0.01
    %v650 = vmul.f32 %v642, 0.01
    %v651 = vmul.f32 %v645, 0.01
    %v652 = vsel %vm646, %v639, %v649
    %v653 = vsel %vm647, %v642, %v650
    %v654 = vsel %vm648, %v645, %v651
    %vm655 = vcmp.gt.f32.partialorder %v407, 0.5
    %vm656 = vcmp.gt.f32.partialorder %v408, 0.5
    %vm657 = vcmp.gt.f32.partialorder %v409, 0.5
    %v658 = vsel %vm655, %v652, -1e+30
    %v659 = vsel %vm656, %v653, -1e+30
    %v660 = vsel %vm657, %v654, -1e+30
    %v661 = vsel %vm120, %v658, -inf
    %v662 = vsel %vm120, %v659, -inf
    %v663 = vsel %vm120, %v660, -inf
    %v664 = vmax.f32 %v661, %v662
    %v665 = vmax.f32 %v664, %v663
    %v666 = vrot.slane %v665, 4
    %v667 = vmax.f32 %v665, %v666
    %v668 = vrot.slane %v667, 2
    %v669 = vmax.f32 %v667, %v668
    %v670 = vrot.slane %v669, 1
    %v671 = vmax.f32 %v669, %v670
    %v672 = vsub.f32 %v658, %v671
    %v673 = vsub.f32 %v659, %v671
    %v674 = vsub.f32 %v660, %v671
    %v675 = vmul.f32 %v672, 1.442695
    %v676 = vpow.pop %v675
    %v677 = vmul.f32 %v673, 1.442695
    %v678 = vpow.pop %v677
    %v679 = vmul.f32 %v674, 1.442695
    %v680 = vpow.pop %v679
    %v681 = vmul.f32 %v676, %v407
    %v682 = vmul.f32 %v678, %v408
    %v683 = vmul.f32 %v680, %v409
    %v684 = vsel %vm120, %v681, 0.0
    %v685 = vsel %vm120, %v682, 0.0
    %v686 = vadd.f32 %v684, %v685
    %v687 = vsel %vm120, %v683, 0.0
    %v688 = vadd.f32 %v686, %v687
    %v689 = vrot.slane %v688, 4
    %v690 = vadd.f32 %v688, %v689
    %v691 = vrot.slane %v690, 2
    %v692 = vadd.f32 %v690, %v691
    %v693 = vrot.slane %v692, 1
    %v694 = vadd.f32 %v692, %v693
    %vm695 = vcmp.gt.f32.partialorder %v694, 0.0
    %v696 = vsel %vm695, %v694, 1.0
    %v697 = vrcp.pop %v696
    %v698 = vmul.f32 %v681, %v697
    %v699 = vmul.f32 %v682, %v697
    %v700 = vmul.f32 %v683, %v697
    %v701 = vsel %vm120, %v698, 0.0
    %702 = vadd.xlane.f32.xlu0 %v701
    %v703 = vpop.xlane.xlu0 %702
    %v704 = vsel %vm120, %v699, 0.0
    %705 = vadd.xlane.f32.xlu0 %v704
    %v706 = vpop.xlane.xlu0 %705
    %v707 = vsel %vm120, %v700, 0.0
    %708 = vadd.xlane.f32.xlu0 %v707
    %v709 = vpop.xlane.xlu0 %708
    %v710 = vmul.f32 %v703, %v486
    %v711 = vmul.f32 %v706, %v491
    %v712 = vmul.f32 %v709, %v496
    %716 = vrot.lane.b32.xlu0 %v633, 96
    %v717 = vpop.permute.xlu0 %716
    %718 = vrot.lane.b32.xlu0 %v634, 96
    %v719 = vpop.permute.xlu0 %718
    %720 = vrot.lane.b32.xlu0 %v635, 96
    %v721 = vpop.permute.xlu0 %720
    %v725 = vsel %vm636, %v717, 0.0
    %726 = vadd.xlane.f32.xlu0 %v725
    %v727 = vpop.xlane.xlu0 %726
    %v728 = vsel %vm636, %v719, 0.0
    %729 = vadd.xlane.f32.xlu0 %v728
    %v730 = vpop.xlane.xlu0 %729
    %v731 = vsel %vm636, %v721, 0.0
    %732 = vadd.xlane.f32.xlu0 %v731
    %v733 = vpop.xlane.xlu0 %732
    %vm734 = vcmp.gt.f32.partialorder %v727, 0.0
    %vm735 = vcmp.gt.f32.partialorder %v730, 0.0
    %vm736 = vcmp.gt.f32.partialorder %v733, 0.0
    %v737 = vmul.f32 %v727, 0.01
    %v738 = vmul.f32 %v730, 0.01
    %v739 = vmul.f32 %v733, 0.01
    %v740 = vsel %vm734, %v727, %v737
    %v741 = vsel %vm735, %v730, %v738
    %v742 = vsel %vm736, %v733, %v739
    %v743 = vsel %vm655, %v740, -1e+30
    %v744 = vsel %vm656, %v741, -1e+30
    %v745 = vsel %vm657, %v742, -1e+30
    %v746 = vsel %vm120, %v743, -inf
    %v747 = vsel %vm120, %v744, -inf
    %v748 = vsel %vm120, %v745, -inf
    %v749 = vmax.f32 %v746, %v747
    %v750 = vmax.f32 %v749, %v748
    %v751 = vrot.slane %v750, 4
    %v752 = vmax.f32 %v750, %v751
    %v753 = vrot.slane %v752, 2
    %v754 = vmax.f32 %v752, %v753
    %v755 = vrot.slane %v754, 1
    %v756 = vmax.f32 %v754, %v755
    %v757 = vsub.f32 %v743, %v756
    %v758 = vsub.f32 %v744, %v756
    %v759 = vsub.f32 %v745, %v756
    %v760 = vmul.f32 %v757, 1.442695
    %v761 = vpow.pop %v760
    %v762 = vmul.f32 %v758, 1.442695
    %v763 = vpow.pop %v762
    %v764 = vmul.f32 %v759, 1.442695
    %v765 = vpow.pop %v764
    %v766 = vmul.f32 %v761, %v407
    %v767 = vmul.f32 %v763, %v408
    %v768 = vmul.f32 %v765, %v409
    %v769 = vsel %vm120, %v766, 0.0
    %v770 = vsel %vm120, %v767, 0.0
    %v771 = vadd.f32 %v769, %v770
    %v772 = vsel %vm120, %v768, 0.0
    %v773 = vadd.f32 %v771, %v772
    %v774 = vrot.slane %v773, 4
    %v775 = vadd.f32 %v773, %v774
    %v776 = vrot.slane %v775, 2
    %v777 = vadd.f32 %v775, %v776
    %v778 = vrot.slane %v777, 1
    %v779 = vadd.f32 %v777, %v778
    %vm780 = vcmp.gt.f32.partialorder %v779, 0.0
    %v781 = vsel %vm780, %v779, 1.0
    %v782 = vrcp.pop %v781
    %v783 = vmul.f32 %v766, %v782
    %v784 = vmul.f32 %v767, %v782
    %v785 = vmul.f32 %v768, %v782
    %v786 = vsel %vm120, %v783, 0.0
    %787 = vadd.xlane.f32.xlu0 %v786
    %v788 = vpop.xlane.xlu0 %787
    %v789 = vsel %vm120, %v784, 0.0
    %790 = vadd.xlane.f32.xlu0 %v789
    %v791 = vpop.xlane.xlu0 %790
    %v792 = vsel %vm120, %v785, 0.0
    %793 = vadd.xlane.f32.xlu0 %v792
    %v794 = vpop.xlane.xlu0 %793
    %v795 = vmul.f32 %v788, %v486
    %v796 = vmul.f32 %v791, %v491
    %v797 = vmul.f32 %v794, %v496
    %v798 = vsel %vm636, %v710, %v795
    %v799 = vsel %vm636, %v711, %v796
    %v800 = vsel %vm636, %v712, %v797
    %801 = vxpose.xlu0.b32.start [1/16] %v407, 128
    %802 = vxpose.xlu0.b32.cont [2/16] %v408, 128
    %803 = vxpose.xlu0.b32.cont [3/16] %v409, 128
    %804 = vxpose.xlu0.b32.cont [4/16] 0.0, 128
    %805 = vxpose.xlu0.b32.cont [5/16] 0.0, 128
    %806 = vxpose.xlu0.b32.cont [6/16] 0.0, 128
    %807 = vxpose.xlu0.b32.cont [7/16] 0.0, 128
    %808 = vxpose.xlu0.b32.cont [8/16] 0.0, 128
    %809 = vxpose.xlu0.b32.cont [9/16] 0.0, 128
    %810 = vxpose.xlu0.b32.cont [10/16] 0.0, 128
    %811 = vxpose.xlu0.b32.cont [11/16] 0.0, 128
    %812 = vxpose.xlu0.b32.cont [12/16] 0.0, 128
    %813 = vxpose.xlu0.b32.cont [13/16] 0.0, 128
    %814 = vxpose.xlu0.b32.cont [14/16] 0.0, 128
    %815 = vxpose.xlu0.b32.cont [15/16] 0.0, 128
    %816 = vxpose.xlu0.b32.end [16/16] 0.0, 128
    %v817 = vpop.trf.xlu0
    %v818 = vpop.trf.xlu0
    %v819 = vpop.trf.xlu0
    %v820 = vpop.trf.xlu0
    %v821 = vpop.trf.xlu0
    %v822 = vpop.trf.xlu0
    %v823 = vpop.trf.xlu0
    %v824 = vpop.trf.xlu0
    %v825 = vpop.trf.xlu0
    %v826 = vpop.trf.xlu0
    %v827 = vpop.trf.xlu0
    %v828 = vpop.trf.xlu0
    %v829 = vpop.trf.xlu0
    %v830 = vpop.trf.xlu0
    %v831 = vpop.trf.xlu0
    %v832 = vpop.trf.xlu0
    %vm833 = vcmask 195584
    %v835 = vsel %vm833, %v817, 0
    %837 = vmatprep.subr.mxu0 0.0
    %838 = vmatpush1.msra.mxu0 0.0
    %839 = vmatprep.subr.mxu0 0.0
    %840 = vmatpush1.msra.mxu0 0.0
    %841 = vmatprep.subr.mxu0 0.0
    %842 = vmatpush1.msra.mxu0 0.0
    %843 = vmatprep.subr.mxu0 0.0
    %844 = vmatpush1.msra.mxu0 0.0
    %845 = vmatprep.subr.mxu0 0.0
    %846 = vmatpush1.msra.mxu0 0.0
    %847 = vmatprep.subr.mxu0 0.0
    %848 = vmatpush1.msra.mxu0 0.0
    %849 = vmatprep.subr.mxu0 0.0
    %850 = vmatpush1.msra.mxu0 0.0
    %851 = vmatprep.subr.mxu0 0.0
    %852 = vmatpush1.msra.mxu0 0.0
    %853 = vmatprep.subr.mxu0 0.0
    %854 = vmatpush1.msra.mxu0 0.0
    %855 = vmatprep.subr.mxu0 0.0
    %856 = vmatpush1.msra.mxu0 0.0
    %857 = vmatprep.subr.mxu0 0.0
    %858 = vmatpush1.msra.mxu0 0.0
    %859 = vmatprep.subr.mxu0 0.0
    %860 = vmatpush1.msra.mxu0 0.0
    %861 = vmatprep.subr.mxu0 0.0
    %862 = vmatpush1.msra.mxu0 0.0
    %863 = vmatprep.subr.mxu0 0.0
    %864 = vmatpush1.msra.mxu0 %v800
    %865 = vmatprep.subr.mxu0 0.0
    %866 = vmatpush1.msra.mxu0 %v799
    %867 = vmatprep.subr.mxu0 0.0
    %868 = vmatpush1.msra.mxu0 %v798
    %869 = vmatprep.subr.mxu0 0.0
    %870 = vmatpush2.msra.mxu0 0.0
    %871 = vmatprep.subr.mxu0 0.0
    %872 = vmatpush2.msra.mxu0 0.0
    %873 = vmatprep.subr.mxu0 0.0
    %874 = vmatpush2.msra.mxu0 0.0
    %875 = vmatprep.subr.mxu0 0.0
    %876 = vmatpush2.msra.mxu0 0.0
    %877 = vmatprep.subr.mxu0 0.0
    %878 = vmatpush2.msra.mxu0 0.0
    %879 = vmatprep.subr.mxu0 0.0
    %880 = vmatpush2.msra.mxu0 0.0
    %881 = vmatprep.subr.mxu0 0.0
    %882 = vmatpush2.msra.mxu0 0.0
    %883 = vmatprep.subr.mxu0 0.0
    %884 = vmatpush2.msra.mxu0 0.0
    %885 = vmatprep.subr.mxu0 0.0
    %886 = vmatpush2.msra.mxu0 0.0
    %887 = vmatprep.subr.mxu0 0.0
    %888 = vmatpush2.msra.mxu0 0.0
    %889 = vmatprep.subr.mxu0 0.0
    %890 = vmatpush2.msra.mxu0 0.0
    %891 = vmatprep.subr.mxu0 0.0
    %892 = vmatpush2.msra.mxu0 0.0
    %893 = vmatprep.subr.mxu0 0.0
    %894 = vmatpush2.msra.mxu0 0.0
    %895 = vmatprep.subr.mxu0 0.0
    %896 = vmatpush2.msra.mxu0 0.0
    %897 = vmatprep.subr.mxu0 0.0
    %898 = vmatpush2.msra.mxu0 0.0
    %899 = vmatprep.subr.mxu0 0.0
    %900 = vmatpush2.msra.mxu0 0.0
    %901 = vmatprep.mubr.f32.mxu0 0.0
    %902 = vmatmul.mubr.f32.gmra.mxu0 %v835
    %v903 = vpop.f32.mrf.mxu0
    %v904 = vadd.f32 0.0, %v903
    %v905 = vpop.f32.mrf.mxu0
    %906 = vdwg.mxu0
    %vm907 = vcmask 523264
    %908 = vst.msk [vmem:[#allocation2] sm:$0xff] %vm907, %v904
    // Predicated region
    $region46: #{tpu_custom_call.1} parent=1 // pred_check
      _
    $region47: #{tpu_custom_call.1} parent=1 // pred_check_branch
      %910 = sbr.rel (0) target = $region49
    $region48: #{tpu_custom_call.1} parent=1 // pred_region
      %s912 = ssub.s32 128, 128
      %913 = vsyncadd [#allocation3], %s912
      %s915 = sshll.u32 [#allocation2], 4
      %s916 = int_to_ptr.vmem [resolvable:$true] %s915
      %918 = dma.vmem_to_hbm [thread:$0]  %s916, 128, %s11, [#allocation3]
    $region49: #{tpu_custom_call.1} parent=1 // pred_fallthru
      _
    // Predicated region
    $region50: #{tpu_custom_call.1} parent=1 // pred_check
      _
    $region51: #{tpu_custom_call.1} parent=1 // pred_check_branch
      %920 = sbr.rel (0) target = $region53
    $region52: #{tpu_custom_call.1} parent=1 // pred_region
      %921 = dma.done [#allocation3], 128
    $region53: #{tpu_custom_call.1} parent=1 // pred_fallthru
      _
    %922 = vsyncpa [#allocation3], 1

</llo_original>
